<compile_context>
chip_gen: v6e
topology: v6e:2x2x1
jax: 0.10.0
libtpu: 0.0.40
codegen_flags: <defaults>
</compile_context>

<pallas_src>
import math

import jax
import jax.numpy as jnp
from jax.experimental import pallas as pl
from jax.experimental.pallas import tpu as pltpu


def _round_up(n, m):
    return ((n + m - 1) // m) * m


def qnet_kernel(xa_ref, w1_ref, b1_ref, wfc_ref, bfc_ref, wq_ref, bq_ref,
                out_ref):
    # Fused Linear(3->128) + Linear(1->128): [256,4] @ [4,TB] -> [256,TB].
    # (block-diagonal weight == compute obs- and act- halves in one contraction)
    h1 = jnp.dot(w1_ref[...], xa_ref[...], preferred_element_type=jnp.float32)
    h1 = jnp.maximum(h1 + b1_ref[...], 0.0)

    # Linear(256->128): bf16 x bf16 -> f32 accumulate, single K=256 matmul.
    h2 = jnp.dot(wfc_ref[...], h1.astype(jnp.bfloat16),
                 preferred_element_type=jnp.float32)
    h2 = jnp.maximum(h2 + bfc_ref[...], 0.0)

    # Linear(128->1): [1,128] @ [128,TB] -> [1,TB] (lane-dense q row).
    q = jnp.dot(wq_ref[...], h2.astype(jnp.bfloat16),
                preferred_element_type=jnp.float32)
    out_ref[...] = (q + bq_ref[0]).astype(out_ref.dtype)


def qnet_forward(x, a, params, tile_b=512):
    """x: [B, 3] observations, a: [B, 1] actions -> q: [B, 1]."""
    w1_t, b1_t, wfc_t, bfc_t, wq_t, bq = params
    B = x.shape[0]

    # Batch tile: lane-dense (multiple of 128), capped at `tile_b`.
    tb = min(tile_b, _round_up(max(B, 1), 128))
    b_pad = _round_up(B, tb)

    xa = jnp.concatenate([x, a], axis=1).astype(jnp.float32)     # [B, 4]
    if b_pad != B:
        xa = jnp.pad(xa, ((0, b_pad - B), (0, 0)))               # pad batch
    xa_t = xa.T                                                  # [4, B_pad]

    grid = (b_pad // tb,)

    out = pl.pallas_call(
        qnet_kernel,
        out_shape=jax.ShapeDtypeStruct((1, b_pad), jnp.float32),
        grid=grid,
        in_specs=[
            pl.BlockSpec((4, tb), lambda i: (0, i)),             # xa_t (tiled)
            pl.BlockSpec((256, 4), lambda i: (0, 0)),            # w1_t  (VMEM-resident)
            pl.BlockSpec((256, 1), lambda i: (0, 0)),            # b1_t
            pl.BlockSpec((128, 256), lambda i: (0, 0)),          # wfc_t (bf16)
            pl.BlockSpec((128, 1), lambda i: (0, 0)),            # bfc_t
            pl.BlockSpec((1, 128), lambda i: (0, 0)),            # wq_t  (bf16)
            pl.BlockSpec(memory_space=pltpu.MemorySpace.SMEM),   # b_q scalar
        ],
        out_specs=pl.BlockSpec((1, tb), lambda i: (0, i)),       # lane-dense q
        compiler_params=pltpu.CompilerParams(
            dimension_semantics=("parallel",)),                  # megacore on v7x
    )(xa_t, w1_t, b1_t, wfc_t, bfc_t, wq_t, bq)

    return out[0, :B].reshape(B, 1)


def init_params(key):
    """Deterministic init mirroring PyTorch nn.Linear default:
    U(-1/sqrt(fan_in), 1/sqrt(fan_in)) for both weight and bias."""
    def linear(key, fan_in, fan_out):
        k_w, k_b = jax.random.split(key)
        bound = 1.0 / math.sqrt(fan_in)
        w = jax.random.uniform(k_w, (fan_in, fan_out), jnp.float32, -bound, bound)
        b = jax.random.uniform(k_b, (fan_out,), jnp.float32, -bound, bound)
        return w, b

    k1, k2, k3, k4 = jax.random.split(key, 4)
    w_obs, b_obs = linear(k1, 3, 128)
    w_act, b_act = linear(k2, 1, 128)
    w_fc, b_fc = linear(k3, 256, 128)
    w_q, b_q = linear(k4, 128, 1)

    # Fused layer-1 weight: block-diag so [x | a] @ W1 == [obs(x) | act(a)].
    w1 = jnp.zeros((4, 256), jnp.float32)
    w1 = w1.at[:3, :128].set(w_obs)
    w1 = w1.at[3:, 128:].set(w_act)
    b1 = jnp.concatenate([b_obs, b_act])                         # [256]

    # Transposed (feature-major) layout; fc / q weights in bf16.
    w1_t = w1.T                                                  # [256, 4] f32
    b1_t = b1.reshape(256, 1)                                    # [256, 1] f32
    wfc_t = w_fc.T.astype(jnp.bfloat16)                          # [128, 256]
    bfc_t = b_fc.reshape(128, 1)                                 # [128, 1] f32
    wq_t = w_q.T.astype(jnp.bfloat16)                            # [1, 128]
    bq = b_q.reshape(1)                                          # [1] -> SMEM
    return (w1_t, b1_t, wfc_t, bfc_t, wq_t, bq)


def reference_forward(x, a, params):
    """Pure-JAX f32 reference with the original PyTorch semantics."""
    w1_t, b1_t, wfc_t, bfc_t, wq_t, bq = params
    w1 = w1_t.T.astype(jnp.float32)
    wfc = wfc_t.T.astype(jnp.float32)
    wq = wq_t.T.astype(jnp.float32)
    xa = jnp.concatenate([x, a], axis=1)
    h1 = jax.nn.relu(xa @ w1 + b1_t.reshape(1, -1))
    h2 = jax.nn.relu(h1 @ wfc + bfc_t.reshape(1, -1))
    return h2 @ wq + bq.reshape(1, 1)


if __name__ == "__main__":
    key = jax.random.PRNGKey(0)
    k_params, k_x, k_a, k_x2, k_a2 = jax.random.split(key, 5)

    params = init_params(k_params)

    # Small demo batch (consistent with the module: obs dim 3, act dim 1).
    B = 8
    x = jax.random.normal(k_x, (B, 3), jnp.float32)
    a = jax.random.normal(k_a, (B, 1), jnp.float32)
    q = jax.block_until_ready(qnet_forward(x, a, params))
    q_ref = reference_forward(x, a, params)
    assert q.shape == (B, 1)
    # bf16 matmul operands (f32 accumulate) -> loosen tolerance vs f32 ref.
    assert jnp.allclose(q, q_ref, atol=5e-2, rtol=5e-2), \
        float(jnp.max(jnp.abs(q - q_ref)))

    # Larger batch exercising the tiled, multi-step (parallel) grid path.
    B2 = 1536
    x2 = jax.random.normal(k_x2, (B2, 3), jnp.float32)
    a2 = jax.random.normal(k_a2, (B2, 1), jnp.float32)
    q2 = jax.block_until_ready(qnet_forward(x2, a2, params))
    q2_ref = reference_forward(x2, a2, params)
    assert q2.shape == (B2, 1)
    assert jnp.allclose(q2, q2_ref, atol=5e-2, rtol=5e-2), \
        float(jnp.max(jnp.abs(q2 - q2_ref)))

    print("KERNEL_OK")
</pallas_src>

<mosaic_0001>
module attributes {stable_mosaic.version = 11 : i64} {
  func.func @qnet_kernel(%arg0: i32, %arg1: memref<4x128xf32, #tpu.memory_space<vmem>>, %arg2: memref<256x4xf32, #tpu.memory_space<vmem>>, %arg3: memref<256x1xf32, #tpu.memory_space<vmem>>, %arg4: memref<128x256xbf16, #tpu.memory_space<vmem>>, %arg5: memref<128x1xf32, #tpu.memory_space<vmem>>, %arg6: memref<1x128xbf16, #tpu.memory_space<vmem>>, %arg7: memref<1xf32, #tpu.memory_space<smem>>, %arg8: memref<1x128xf32, #tpu.memory_space<vmem>>) attributes {dimension_semantics = [#tpu.dimension_semantics<parallel>], iteration_bounds = array<i64: 1>, scalar_prefetch = 0 : i64, scratch_operands = 0 : i64, tpu.core_type = #tpu.core_type<tc>, window_params = [{transform_indices = @transform_0, window_bounds = array<i64: 4, 128>}, {pipeline_mode = #tpu.pipeline_mode<synchronous>, transform_indices = @transform_1, window_bounds = array<i64: 256, 4>}, {pipeline_mode = #tpu.pipeline_mode<synchronous>, transform_indices = @transform_2, window_bounds = array<i64: 256, 1>}, {pipeline_mode = #tpu.pipeline_mode<synchronous>, transform_indices = @transform_3, window_bounds = array<i64: 128, 256>}, {pipeline_mode = #tpu.pipeline_mode<synchronous>, transform_indices = @transform_4, window_bounds = array<i64: 128, 1>}, {pipeline_mode = #tpu.pipeline_mode<synchronous>, transform_indices = @transform_5, window_bounds = array<i64: 1, 128>}, {transform_indices = @transform_6, window_bounds = array<i64: 1>}, {transform_indices = @transform_7, window_bounds = array<i64: 1, 128>}]} {
    %c0 = arith.constant 0 : index
    %c0_0 = arith.constant 0 : index
    %0 = vector.load %arg2[%c0, %c0_0] : memref<256x4xf32, #tpu.memory_space<vmem>>, vector<256x4xf32>
    %c0_1 = arith.constant 0 : index
    %c0_2 = arith.constant 0 : index
    %1 = vector.load %arg1[%c0_1, %c0_2] : memref<4x128xf32, #tpu.memory_space<vmem>>, vector<4x128xf32>
    %cst = arith.constant dense<0.000000e+00> : vector<256x128xf32>
    %2 = tpu.matmul %0, %1, %cst {dimension_numbers = #tpu.dot_dimension_numbers<[1], [0], [0], [1], [0, 0, 1, 1], [], []>} : vector<256x4xf32>, vector<4x128xf32>, vector<256x128xf32> -> vector<256x128xf32>
    %c0_3 = arith.constant 0 : index
    %c0_4 = arith.constant 0 : index
    %3 = vector.load %arg3[%c0_3, %c0_4] : memref<256x1xf32, #tpu.memory_space<vmem>>, vector<256x1xf32>
    %4 = vector.broadcast %3 : vector<256x1xf32> to vector<256x128xf32>
    %5 = arith.addf %2, %4 : vector<256x128xf32>
    %cst_5 = arith.constant 0.000000e+00 : f32
    %6 = vector.broadcast %cst_5 : f32 to vector<256x128xf32>
    %7 = arith.maximumf %5, %6 : vector<256x128xf32>
    %c0_6 = arith.constant 0 : index
    %c0_7 = arith.constant 0 : index
    %8 = vector.load %arg4[%c0_6, %c0_7] : memref<128x256xbf16, #tpu.memory_space<vmem>>, vector<128x256xbf16>
    %9 = arith.truncf %7 : vector<256x128xf32> to vector<256x128xbf16>
    %cst_8 = arith.constant dense<0.000000e+00> : vector<128x128xf32>
    %10 = tpu.matmul %8, %9, %cst_8 {dimension_numbers = #tpu.dot_dimension_numbers<[1], [0], [0], [1], [0, 0, 1, 1], [], []>} : vector<128x256xbf16>, vector<256x128xbf16>, vector<128x128xf32> -> vector<128x128xf32>
    %c0_9 = arith.constant 0 : index
    %c0_10 = arith.constant 0 : index
    %11 = vector.load %arg5[%c0_9, %c0_10] : memref<128x1xf32, #tpu.memory_space<vmem>>, vector<128x1xf32>
    %12 = vector.broadcast %11 : vector<128x1xf32> to vector<128x128xf32>
    %13 = arith.addf %10, %12 : vector<128x128xf32>
    %cst_11 = arith.constant 0.000000e+00 : f32
    %14 = vector.broadcast %cst_11 : f32 to vector<128x128xf32>
    %15 = arith.maximumf %13, %14 : vector<128x128xf32>
    %c0_12 = arith.constant 0 : index
    %c0_13 = arith.constant 0 : index
    %16 = vector.load %arg6[%c0_12, %c0_13] : memref<1x128xbf16, #tpu.memory_space<vmem>>, vector<1x128xbf16>
    %17 = arith.truncf %15 : vector<128x128xf32> to vector<128x128xbf16>
    %cst_14 = arith.constant dense<0.000000e+00> : vector<1x128xf32>
    %18 = tpu.matmul %16, %17, %cst_14 {dimension_numbers = #tpu.dot_dimension_numbers<[1], [0], [0], [1], [0, 0, 1, 1], [], []>} : vector<1x128xbf16>, vector<128x128xbf16>, vector<1x128xf32> -> vector<1x128xf32>
    %c0_15 = arith.constant 0 : index
    %19 = memref.load %arg7[%c0_15] : memref<1xf32, #tpu.memory_space<smem>>
    %20 = vector.broadcast %19 : f32 to vector<1x128xf32>
    %21 = arith.addf %18, %20 : vector<1x128xf32>
    %c0_16 = arith.constant 0 : index
    %c0_17 = arith.constant 0 : index
    %22 = vector.load %arg8[%c0_16, %c0_17] : memref<1x128xf32, #tpu.memory_space<vmem>>, vector<1x128xf32>
    tpu.vector_store %arg8[%c0_16, %c0_17], %21 {strides = array<i32>} : memref<1x128xf32, #tpu.memory_space<vmem>>, vector<1x128xf32>,
    return
  }
  func.func @transform_0(%arg0: i32) -> (i32, i32) {
    %c0_i32 = arith.constant 0 : i32
    %c0_i32_0 = arith.constant 0 : i32
    return %c0_i32, %arg0 : i32, i32
  }
  func.func @transform_1(%arg0: i32) -> (i32, i32) {
    %c0_i32 = arith.constant 0 : i32
    %c0_i32_0 = arith.constant 0 : i32
    %c0_i32_1 = arith.constant 0 : i32
    return %c0_i32, %c0_i32_0 : i32, i32
  }
  func.func @transform_2(%arg0: i32) -> (i32, i32) {
    %c0_i32 = arith.constant 0 : i32
    %c0_i32_0 = arith.constant 0 : i32
    %c0_i32_1 = arith.constant 0 : i32
    return %c0_i32, %c0_i32_0 : i32, i32
  }
  func.func @transform_3(%arg0: i32) -> (i32, i32) {
    %c0_i32 = arith.constant 0 : i32
    %c0_i32_0 = arith.constant 0 : i32
    %c0_i32_1 = arith.constant 0 : i32
    return %c0_i32, %c0_i32_0 : i32, i32
  }
  func.func @transform_4(%arg0: i32) -> (i32, i32) {
    %c0_i32 = arith.constant 0 : i32
    %c0_i32_0 = arith.constant 0 : i32
    %c0_i32_1 = arith.constant 0 : i32
    return %c0_i32, %c0_i32_0 : i32, i32
  }
  func.func @transform_5(%arg0: i32) -> (i32, i32) {
    %c0_i32 = arith.constant 0 : i32
    %c0_i32_0 = arith.constant 0 : i32
    %c0_i32_1 = arith.constant 0 : i32
    return %c0_i32, %c0_i32_0 : i32, i32
  }
  func.func @transform_6(%arg0: i32) -> i32 {
    %c0_i32 = arith.constant 0 : i32
    %c0_i32_0 = arith.constant 0 : i32
    return %c0_i32 : i32
  }
  func.func @transform_7(%arg0: i32) -> (i32, i32) {
    %c0_i32 = arith.constant 0 : i32
    %c0_i32_0 = arith.constant 0 : i32
    return %c0_i32, %arg0 : i32, i32
  }
}

</mosaic_0001>

<llo_original>
// kernel: tpu_custom_call.1
$region0: #{tpu_custom_call.1}
  #allocation0 [shape = 'u32[]', space=smem, size = 0x4, offset = 0x4, fixed_abs, tag = 'smem constant byte address 0x4 - core index']
  #allocation1 [shape = 'u32[144,128]{1,0:T(1,128)}', space=vmem, size = 0x12000, scoped, tag = 'internal scratch']
  #allocation2 [shape = 'f32[1]{0:T(128)S(6)}', space=smem, size = 0x200, scoped, tag = 'scoped memory for tpu_custom_call.1']
  %s0 = inlined_call_operand.vmem [shape: f32[4,128], index: 0, kind: input, shape index: {}]
  %s1 = inlined_call_operand.vmem [shape: f32[256,4], index: 1, kind: input, shape index: {}]
  %s2 = inlined_call_operand.vmem [shape: f32[256,1], index: 2, kind: input, shape index: {}]
  %s3 = inlined_call_operand.vmem [shape: bf16[128,256], index: 3, kind: input, shape index: {}]
  %s4 = inlined_call_operand.vmem [shape: f32[128,1], index: 4, kind: input, shape index: {}]
  %s5 = inlined_call_operand.vmem [shape: bf16[1,128], index: 5, kind: input, shape index: {}]
  %s6 = inlined_call_operand.<no memory space> [shape: f32[1], index: 6, kind: input, shape index: {}]
  %s7 = inlined_call_operand.hbm [shape: f32[1,128], index: 7, kind: output, shape index: {}]
  %s8 = sld [smem:[#allocation0]]
  $region38: #{tpu_custom_call.1} parent=0
    _
  %s10 = ssub.s32 1, %s8
  %s11 = scalar_select 0, %s10, %s8
  %12 = sst [smem:[#allocation2]] %s6
  $region1: #{tpu_custom_call.1} parent=0
    #allocation3 [shape = 'u8[512]{0}', space=vmem, size = 0x400, scoped, tag = 'output window, operand 0, single buffered']
    #allocation4 [shape = 's32[1]{0}', space=sflag, size = 0x4, scoped, tag = 'scoped memory for tpu_custom_call.1']
    %13 = vsyncpa [#allocation4], 0
    // Predicated region
    $region2: #{tpu_custom_call.1} parent=1 // pred_check
      _
    $region3: #{tpu_custom_call.1} parent=1 // pred_check_branch
      %15 = sbr.rel (0) target = $region5
    $region4: #{tpu_custom_call.1} parent=1 // pred_region
      _
    $region5: #{tpu_custom_call.1} parent=1 // pred_fallthru
      _
    // Predicated region
    $region6: #{tpu_custom_call.1} parent=1 // pred_check
      _
    $region7: #{tpu_custom_call.1} parent=1 // pred_check_branch
      %17 = sbr.rel (0) target = $region9
    $region8: #{tpu_custom_call.1} parent=1 // pred_region
      _
    $region9: #{tpu_custom_call.1} parent=1 // pred_fallthru
      _
    // Predicated region
    $region10: #{tpu_custom_call.1} parent=1 // pred_check
      _
    $region11: #{tpu_custom_call.1} parent=1 // pred_check_branch
      %19 = sbr.rel (0) target = $region13
    $region12: #{tpu_custom_call.1} parent=1 // pred_region
      _
    $region13: #{tpu_custom_call.1} parent=1 // pred_fallthru
      _
    // Predicated region
    $region14: #{tpu_custom_call.1} parent=1 // pred_check
      _
    $region15: #{tpu_custom_call.1} parent=1 // pred_check_branch
      %21 = sbr.rel (0) target = $region17
    $region16: #{tpu_custom_call.1} parent=1 // pred_region
      _
    $region17: #{tpu_custom_call.1} parent=1 // pred_fallthru
      _
    // Predicated region
    $region18: #{tpu_custom_call.1} parent=1 // pred_check
      _
    $region19: #{tpu_custom_call.1} parent=1 // pred_check_branch
      %23 = sbr.rel (0) target = $region21
    $region20: #{tpu_custom_call.1} parent=1 // pred_region
      _
    $region21: #{tpu_custom_call.1} parent=1 // pred_fallthru
      _
    // Predicated region
    $region22: #{tpu_custom_call.1} parent=1 // pred_check
      _
    $region23: #{tpu_custom_call.1} parent=1 // pred_check_branch
      %25 = sbr.rel (0) target = $region25
    $region24: #{tpu_custom_call.1} parent=1 // pred_region
      _
    $region25: #{tpu_custom_call.1} parent=1 // pred_fallthru
      _
    // Predicated region
    $region26: #{tpu_custom_call.1} parent=1 // pred_check
      _
    $region27: #{tpu_custom_call.1} parent=1 // pred_check_branch
      %27 = sbr.rel (0) target = $region29
    $region28: #{tpu_custom_call.1} parent=1 // pred_region
      _
    $region29: #{tpu_custom_call.1} parent=1 // pred_fallthru
      _
    %v29 = vld [vmem:[%s1] sm:$0xff]
    %v30 = vld [vmem:[%s1 + $0x8] sm:$0xff]
    %v31 = vld [vmem:[%s1 + $0x10] sm:$0xff]
    %v32 = vld [vmem:[%s1 + $0x18] sm:$0xff]
    %v33 = vld [vmem:[%s1 + $0x20] sm:$0xff]
    %v34 = vld [vmem:[%s1 + $0x28] sm:$0xff]
    %v35 = vld [vmem:[%s1 + $0x30] sm:$0xff]
    %v36 = vld [vmem:[%s1 + $0x38] sm:$0xff]
    %v37 = vld [vmem:[%s1 + $0x40] sm:$0xff]
    %v38 = vld [vmem:[%s1 + $0x48] sm:$0xff]
    %v39 = vld [vmem:[%s1 + $0x50] sm:$0xff]
    %v40 = vld [vmem:[%s1 + $0x58] sm:$0xff]
    %v41 = vld [vmem:[%s1 + $0x60] sm:$0xff]
    %v42 = vld [vmem:[%s1 + $0x68] sm:$0xff]
    %v43 = vld [vmem:[%s1 + $0x70] sm:$0xff]
    %v44 = vld [vmem:[%s1 + $0x78] sm:$0xff]
    %v45 = vld [vmem:[%s1 + $0x80] sm:$0xff]
    %v46 = vld [vmem:[%s1 + $0x88] sm:$0xff]
    %v47 = vld [vmem:[%s1 + $0x90] sm:$0xff]
    %v48 = vld [vmem:[%s1 + $0x98] sm:$0xff]
    %v49 = vld [vmem:[%s1 + $0xa0] sm:$0xff]
    %v50 = vld [vmem:[%s1 + $0xa8] sm:$0xff]
    %v51 = vld [vmem:[%s1 + $0xb0] sm:$0xff]
    %v52 = vld [vmem:[%s1 + $0xb8] sm:$0xff]
    %v53 = vld [vmem:[%s1 + $0xc0] sm:$0xff]
    %v54 = vld [vmem:[%s1 + $0xc8] sm:$0xff]
    %v55 = vld [vmem:[%s1 + $0xd0] sm:$0xff]
    %v56 = vld [vmem:[%s1 + $0xd8] sm:$0xff]
    %v57 = vld [vmem:[%s1 + $0xe0] sm:$0xff]
    %v58 = vld [vmem:[%s1 + $0xe8] sm:$0xff]
    %v59 = vld [vmem:[%s1 + $0xf0] sm:$0xff]
    %v60 = vld [vmem:[%s1 + $0xf8] sm:$0xff]
    %v61 = vld [vmem:[%s0] sm:$0xf]
    %v62 = vld [vmem:[%s2] sm:$0xff]
    %v63 = vld [vmem:[%s2 + $0x8] sm:$0xff]
    %v64 = vld [vmem:[%s2 + $0x10] sm:$0xff]
    %v65 = vld [vmem:[%s2 + $0x18] sm:$0xff]
    %v66 = vld [vmem:[%s2 + $0x20] sm:$0xff]
    %v67 = vld [vmem:[%s2 + $0x28] sm:$0xff]
    %v68 = vld [vmem:[%s2 + $0x30] sm:$0xff]
    %v69 = vld [vmem:[%s2 + $0x38] sm:$0xff]
    %v70 = vld [vmem:[%s2 + $0x40] sm:$0xff]
    %v71 = vld [vmem:[%s2 + $0x48] sm:$0xff]
    %v72 = vld [vmem:[%s2 + $0x50] sm:$0xff]
    %v73 = vld [vmem:[%s2 + $0x58] sm:$0xff]
    %v74 = vld [vmem:[%s2 + $0x60] sm:$0xff]
    %v75 = vld [vmem:[%s2 + $0x68] sm:$0xff]
    %v76 = vld [vmem:[%s2 + $0x70] sm:$0xff]
    %v77 = vld [vmem:[%s2 + $0x78] sm:$0xff]
    %v78 = vld [vmem:[%s2 + $0x80] sm:$0xff]
    %v79 = vld [vmem:[%s2 + $0x88] sm:$0xff]
    %v80 = vld [vmem:[%s2 + $0x90] sm:$0xff]
    %v81 = vld [vmem:[%s2 + $0x98] sm:$0xff]
    %v82 = vld [vmem:[%s2 + $0xa0] sm:$0xff]
    %v83 = vld [vmem:[%s2 + $0xa8] sm:$0xff]
    %v84 = vld [vmem:[%s2 + $0xb0] sm:$0xff]
    %v85 = vld [vmem:[%s2 + $0xb8] sm:$0xff]
    %v86 = vld [vmem:[%s2 + $0xc0] sm:$0xff]
    %v87 = vld [vmem:[%s2 + $0xc8] sm:$0xff]
    %v88 = vld [vmem:[%s2 + $0xd0] sm:$0xff]
    %v89 = vld [vmem:[%s2 + $0xd8] sm:$0xff]
    %v90 = vld [vmem:[%s2 + $0xe0] sm:$0xff]
    %v91 = vld [vmem:[%s2 + $0xe8] sm:$0xff]
    %v92 = vld [vmem:[%s2 + $0xf0] sm:$0xff]
    %v93 = vld [vmem:[%s2 + $0xf8] sm:$0xff]
    %95 = vset.pattern.permute.xlu0 0
    %96 = vperm.xlu0 %95, %v62
    %v97 = vpop.permute.xlu0 %96
    %100 = vset.pattern.permute.xlu0 0
    %101 = vperm.xlu0 %100, %v63
    %v102 = vpop.permute.xlu0 %101
    %105 = vset.pattern.permute.xlu0 0
    %106 = vperm.xlu0 %105, %v64
    %v107 = vpop.permute.xlu0 %106
    %110 = vset.pattern.permute.xlu0 0
    %111 = vperm.xlu0 %110, %v65
    %v112 = vpop.permute.xlu0 %111
    %115 = vset.pattern.permute.xlu0 0
    %116 = vperm.xlu0 %115, %v66
    %v117 = vpop.permute.xlu0 %116
    %120 = vset.pattern.permute.xlu0 0
    %121 = vperm.xlu0 %120, %v67
    %v122 = vpop.permute.xlu0 %121
    %125 = vset.pattern.permute.xlu0 0
    %126 = vperm.xlu0 %125, %v68
    %v127 = vpop.permute.xlu0 %126
    %130 = vset.pattern.permute.xlu0 0
    %131 = vperm.xlu0 %130, %v69
    %v132 = vpop.permute.xlu0 %131
    %135 = vset.pattern.permute.xlu0 0
    %136 = vperm.xlu0 %135, %v70
    %v137 = vpop.permute.xlu0 %136
    %140 = vset.pattern.permute.xlu0 0
    %141 = vperm.xlu0 %140, %v71
    %v142 = vpop.permute.xlu0 %141
    %145 = vset.pattern.permute.xlu0 0
    %146 = vperm.xlu0 %145, %v72
    %v147 = vpop.permute.xlu0 %146
    %150 = vset.pattern.permute.xlu0 0
    %151 = vperm.xlu0 %150, %v73
    %v152 = vpop.permute.xlu0 %151
    %155 = vset.pattern.permute.xlu0 0
    %156 = vperm.xlu0 %155, %v74
    %v157 = vpop.permute.xlu0 %156
    %160 = vset.pattern.permute.xlu0 0
    %161 = vperm.xlu0 %160, %v75
    %v162 = vpop.permute.xlu0 %161
    %165 = vset.pattern.permute.xlu0 0
    %166 = vperm.xlu0 %165, %v76
    %v167 = vpop.permute.xlu0 %166
    %170 = vset.pattern.permute.xlu0 0
    %171 = vperm.xlu0 %170, %v77
    %v172 = vpop.permute.xlu0 %171
    %175 = vset.pattern.permute.xlu0 0
    %176 = vperm.xlu0 %175, %v78
    %v177 = vpop.permute.xlu0 %176
    %180 = vset.pattern.permute.xlu0 0
    %181 = vperm.xlu0 %180, %v79
    %v182 = vpop.permute.xlu0 %181
    %185 = vset.pattern.permute.xlu0 0
    %186 = vperm.xlu0 %185, %v80
    %v187 = vpop.permute.xlu0 %186
    %190 = vset.pattern.permute.xlu0 0
    %191 = vperm.xlu0 %190, %v81
    %v192 = vpop.permute.xlu0 %191
    %195 = vset.pattern.permute.xlu0 0
    %196 = vperm.xlu0 %195, %v82
    %v197 = vpop.permute.xlu0 %196
    %200 = vset.pattern.permute.xlu0 0
    %201 = vperm.xlu0 %200, %v83
    %v202 = vpop.permute.xlu0 %201
    %205 = vset.pattern.permute.xlu0 0
    %206 = vperm.xlu0 %205, %v84
    %v207 = vpop.permute.xlu0 %206
    %210 = vset.pattern.permute.xlu0 0
    %211 = vperm.xlu0 %210, %v85
    %v212 = vpop.permute.xlu0 %211
    %215 = vset.pattern.permute.xlu0 0
    %216 = vperm.xlu0 %215, %v86
    %v217 = vpop.permute.xlu0 %216
    %220 = vset.pattern.permute.xlu0 0
    %221 = vperm.xlu0 %220, %v87
    %v222 = vpop.permute.xlu0 %221
    %225 = vset.pattern.permute.xlu0 0
    %226 = vperm.xlu0 %225, %v88
    %v227 = vpop.permute.xlu0 %226
    %230 = vset.pattern.permute.xlu0 0
    %231 = vperm.xlu0 %230, %v89
    %v232 = vpop.permute.xlu0 %231
    %235 = vset.pattern.permute.xlu0 0
    %236 = vperm.xlu0 %235, %v90
    %v237 = vpop.permute.xlu0 %236
    %240 = vset.pattern.permute.xlu0 0
    %241 = vperm.xlu0 %240, %v91
    %v242 = vpop.permute.xlu0 %241
    %245 = vset.pattern.permute.xlu0 0
    %246 = vperm.xlu0 %245, %v92
    %v247 = vpop.permute.xlu0 %246
    %250 = vset.pattern.permute.xlu0 0
    %251 = vperm.xlu0 %250, %v93
    %v252 = vpop.permute.xlu0 %251
    %vm254 = vcmask 31744
    %v256 = vsel %vm254, %v29, 0
    %v259 = vsel %vm254, %v30, 0
    %v262 = vsel %vm254, %v31, 0
    %v265 = vsel %vm254, %v32, 0
    %v268 = vsel %vm254, %v33, 0
    %v271 = vsel %vm254, %v34, 0
    %v274 = vsel %vm254, %v35, 0
    %v277 = vsel %vm254, %v36, 0
    %v280 = vsel %vm254, %v37, 0
    %v283 = vsel %vm254, %v38, 0
    %v286 = vsel %vm254, %v39, 0
    %v289 = vsel %vm254, %v40, 0
    %v292 = vsel %vm254, %v41, 0
    %v295 = vsel %vm254, %v42, 0
    %v298 = vsel %vm254, %v43, 0
    %v301 = vsel %vm254, %v44, 0
    %v304 = vsel %vm254, %v45, 0
    %v307 = vsel %vm254, %v46, 0
    %v310 = vsel %vm254, %v47, 0
    %v313 = vsel %vm254, %v48, 0
    %v316 = vsel %vm254, %v49, 0
    %v319 = vsel %vm254, %v50, 0
    %v322 = vsel %vm254, %v51, 0
    %v325 = vsel %vm254, %v52, 0
    %v328 = vsel %vm254, %v53, 0
    %v331 = vsel %vm254, %v54, 0
    %v334 = vsel %vm254, %v55, 0
    %v337 = vsel %vm254, %v56, 0
    %v340 = vsel %vm254, %v57, 0
    %v343 = vsel %vm254, %v58, 0
    %v346 = vsel %vm254, %v59, 0
    %v349 = vsel %vm254, %v60, 0
    %vm351 = vcmask 1043456
    %v353 = vsel %vm351, %v61, 0
    %355 = vmatprep.subr.mxu0 0.0
    %356 = vmatpush1.msra.mxu0 0.0
    %357 = vmatprep.subr.mxu0 0.0
    %358 = vmatpush1.msra.mxu0 0.0
    %359 = vmatprep.subr.mxu0 0.0
    %360 = vmatpush1.msra.mxu0 0.0
    %361 = vmatprep.subr.mxu0 0.0
    %362 = vmatpush1.msra.mxu0 0.0
    %363 = vmatprep.subr.mxu0 0.0
    %364 = vmatpush1.msra.mxu0 0.0
    %365 = vmatprep.subr.mxu0 0.0
    %366 = vmatpush1.msra.mxu0 0.0
    %367 = vmatprep.subr.mxu0 0.0
    %368 = vmatpush1.msra.mxu0 0.0
    %369 = vmatprep.subr.mxu0 0.0
    %370 = vmatpush1.msra.mxu0 0.0
    %371 = vmatprep.subr.mxu0 0.0
    %372 = vmatpush1.msra.mxu0 0.0
    %373 = vmatprep.subr.mxu0 0.0
    %374 = vmatpush1.msra.mxu0 0.0
    %375 = vmatprep.subr.mxu0 0.0
    %376 = vmatpush1.msra.mxu0 0.0
    %377 = vmatprep.subr.mxu0 0.0
    %378 = vmatpush1.msra.mxu0 0.0
    %379 = vmatprep.subr.mxu0 0.0
    %380 = vmatpush1.msra.mxu0 0.0
    %381 = vmatprep.subr.mxu0 0.0
    %382 = vmatpush1.msra.mxu0 0.0
    %383 = vmatprep.subr.mxu0 0.0
    %384 = vmatpush1.msra.mxu0 0.0
    %385 = vmatprep.subr.mxu0 0.0
    %386 = vmatpush1.msra.mxu0 %v353
    %387 = vmatprep.subr.mxu0 0.0
    %388 = vmatpush2.msra.mxu0 0.0
    %389 = vmatprep.subr.mxu0 0.0
    %390 = vmatpush2.msra.mxu0 0.0
    %391 = vmatprep.subr.mxu0 0.0
    %392 = vmatpush2.msra.mxu0 0.0
    %393 = vmatprep.subr.mxu0 0.0
    %394 = vmatpush2.msra.mxu0 0.0
    %395 = vmatprep.subr.mxu0 0.0
    %396 = vmatpush2.msra.mxu0 0.0
    %397 = vmatprep.subr.mxu0 0.0
    %398 = vmatpush2.msra.mxu0 0.0
    %399 = vmatprep.subr.mxu0 0.0
    %400 = vmatpush2.msra.mxu0 0.0
    %401 = vmatprep.subr.mxu0 0.0
    %402 = vmatpush2.msra.mxu0 0.0
    %403 = vmatprep.subr.mxu0 0.0
    %404 = vmatpush2.msra.mxu0 0.0
    %405 = vmatprep.subr.mxu0 0.0
    %406 = vmatpush2.msra.mxu0 0.0
    %407 = vmatprep.subr.mxu0 0.0
    %408 = vmatpush2.msra.mxu0 0.0
    %409 = vmatprep.subr.mxu0 0.0
    %410 = vmatpush2.msra.mxu0 0.0
    %411 = vmatprep.subr.mxu0 0.0
    %412 = vmatpush2.msra.mxu0 0.0
    %413 = vmatprep.subr.mxu0 0.0
    %414 = vmatpush2.msra.mxu0 0.0
    %415 = vmatprep.subr.mxu0 0.0
    %416 = vmatpush2.msra.mxu0 0.0
    %417 = vmatprep.subr.mxu0 0.0
    %418 = vmatpush2.msra.mxu0 0.0
    %419 = vmatprep.mubr.f32.mxu0 0.0
    %420 = vmatmul.mubr.f32.gmra.mxu0 %v256
    %v421 = vpop.f32.mrf.mxu0
    %v422 = vadd.f32 %v97, %v421
    %v423 = vpop.f32.mrf.mxu0
    %424 = vmatprep.mubr.f32.mxu0 0.0
    %425 = vmatmul.mubr.f32.gmra.mxu0 %v259
    %v426 = vpop.f32.mrf.mxu0
    %v427 = vadd.f32 %v102, %v426
    %v428 = vpop.f32.mrf.mxu0
    %429 = vmatprep.mubr.f32.mxu0 0.0
    %430 = vmatmul.mubr.f32.gmra.mxu0 %v262
    %v431 = vpop.f32.mrf.mxu0
    %v432 = vadd.f32 %v107, %v431
    %v433 = vpop.f32.mrf.mxu0
    %434 = vmatprep.mubr.f32.mxu0 0.0
    %435 = vmatmul.mubr.f32.gmra.mxu0 %v265
    %v436 = vpop.f32.mrf.mxu0
    %v437 = vadd.f32 %v112, %v436
    %v438 = vpop.f32.mrf.mxu0
    %439 = vmatprep.mubr.f32.mxu0 0.0
    %440 = vmatmul.mubr.f32.gmra.mxu0 %v268
    %v441 = vpop.f32.mrf.mxu0
    %v442 = vadd.f32 %v117, %v441
    %v443 = vpop.f32.mrf.mxu0
    %444 = vmatprep.mubr.f32.mxu0 0.0
    %445 = vmatmul.mubr.f32.gmra.mxu0 %v271
    %v446 = vpop.f32.mrf.mxu0
    %v447 = vadd.f32 %v122, %v446
    %v448 = vpop.f32.mrf.mxu0
    %449 = vmatprep.mubr.f32.mxu0 0.0
    %450 = vmatmul.mubr.f32.gmra.mxu0 %v274
    %v451 = vpop.f32.mrf.mxu0
    %v452 = vadd.f32 %v127, %v451
    %v453 = vpop.f32.mrf.mxu0
    %454 = vmatprep.mubr.f32.mxu0 0.0
    %455 = vmatmul.mubr.f32.gmra.mxu0 %v277
    %v456 = vpop.f32.mrf.mxu0
    %v457 = vadd.f32 %v132, %v456
    %v458 = vpop.f32.mrf.mxu0
    %459 = vmatprep.mubr.f32.mxu0 0.0
    %460 = vmatmul.mubr.f32.gmra.mxu0 %v280
    %v461 = vpop.f32.mrf.mxu0
    %v462 = vadd.f32 %v137, %v461
    %v463 = vpop.f32.mrf.mxu0
    %464 = vmatprep.mubr.f32.mxu0 0.0
    %465 = vmatmul.mubr.f32.gmra.mxu0 %v283
    %v466 = vpop.f32.mrf.mxu0
    %v467 = vadd.f32 %v142, %v466
    %v468 = vpop.f32.mrf.mxu0
    %469 = vmatprep.mubr.f32.mxu0 0.0
    %470 = vmatmul.mubr.f32.gmra.mxu0 %v286
    %v471 = vpop.f32.mrf.mxu0
    %v472 = vadd.f32 %v147, %v471
    %v473 = vpop.f32.mrf.mxu0
    %474 = vmatprep.mubr.f32.mxu0 0.0
    %475 = vmatmul.mubr.f32.gmra.mxu0 %v289
    %v476 = vpop.f32.mrf.mxu0
    %v477 = vadd.f32 %v152, %v476
    %v478 = vpop.f32.mrf.mxu0
    %479 = vmatprep.mubr.f32.mxu0 0.0
    %480 = vmatmul.mubr.f32.gmra.mxu0 %v292
    %v481 = vpop.f32.mrf.mxu0
    %v482 = vadd.f32 %v157, %v481
    %v483 = vpop.f32.mrf.mxu0
    %484 = vmatprep.mubr.f32.mxu0 0.0
    %485 = vmatmul.mubr.f32.gmra.mxu0 %v295
    %v486 = vpop.f32.mrf.mxu0
    %v487 = vadd.f32 %v162, %v486
    %v488 = vpop.f32.mrf.mxu0
    %489 = vmatprep.mubr.f32.mxu0 0.0
    %490 = vmatmul.mubr.f32.gmra.mxu0 %v298
    %v491 = vpop.f32.mrf.mxu0
    %v492 = vadd.f32 %v167, %v491
    %v493 = vpop.f32.mrf.mxu0
    %494 = vmatprep.mubr.f32.mxu0 0.0
    %495 = vmatmul.mubr.f32.gmra.mxu0 %v301
    %v496 = vpop.f32.mrf.mxu0
    %v497 = vadd.f32 %v172, %v496
    %v498 = vpop.f32.mrf.mxu0
    %499 = vmatprep.mubr.f32.mxu0 0.0
    %500 = vmatmul.mubr.f32.gmra.mxu0 %v304
    %v501 = vpop.f32.mrf.mxu0
    %v502 = vadd.f32 %v177, %v501
    %v503 = vpop.f32.mrf.mxu0
    %504 = vmatprep.mubr.f32.mxu0 0.0
    %505 = vmatmul.mubr.f32.gmra.mxu0 %v307
    %v506 = vpop.f32.mrf.mxu0
    %v507 = vadd.f32 %v182, %v506
    %v508 = vpop.f32.mrf.mxu0
    %509 = vmatprep.mubr.f32.mxu0 0.0
    %510 = vmatmul.mubr.f32.gmra.mxu0 %v310
    %v511 = vpop.f32.mrf.mxu0
    %v512 = vadd.f32 %v187, %v511
    %v513 = vpop.f32.mrf.mxu0
    %514 = vmatprep.mubr.f32.mxu0 0.0
    %515 = vmatmul.mubr.f32.gmra.mxu0 %v313
    %v516 = vpop.f32.mrf.mxu0
    %v517 = vadd.f32 %v192, %v516
    %v518 = vpop.f32.mrf.mxu0
    %519 = vmatprep.mubr.f32.mxu0 0.0
    %520 = vmatmul.mubr.f32.gmra.mxu0 %v316
    %v521 = vpop.f32.mrf.mxu0
    %v522 = vadd.f32 %v197, %v521
    %v523 = vpop.f32.mrf.mxu0
    %524 = vmatprep.mubr.f32.mxu0 0.0
    %525 = vmatmul.mubr.f32.gmra.mxu0 %v319
    %v526 = vpop.f32.mrf.mxu0
    %v527 = vadd.f32 %v202, %v526
    %v528 = vpop.f32.mrf.mxu0
    %529 = vmatprep.mubr.f32.mxu0 0.0
    %530 = vmatmul.mubr.f32.gmra.mxu0 %v322
    %v531 = vpop.f32.mrf.mxu0
    %v532 = vadd.f32 %v207, %v531
    %v533 = vpop.f32.mrf.mxu0
    %534 = vmatprep.mubr.f32.mxu0 0.0
    %535 = vmatmul.mubr.f32.gmra.mxu0 %v325
    %v536 = vpop.f32.mrf.mxu0
    %v537 = vadd.f32 %v212, %v536
    %v538 = vpop.f32.mrf.mxu0
    %539 = vmatprep.mubr.f32.mxu0 0.0
    %540 = vmatmul.mubr.f32.gmra.mxu0 %v328
    %v541 = vpop.f32.mrf.mxu0
    %v542 = vadd.f32 %v217, %v541
    %v543 = vpop.f32.mrf.mxu0
    %544 = vmatprep.mubr.f32.mxu0 0.0
    %545 = vmatmul.mubr.f32.gmra.mxu0 %v331
    %v546 = vpop.f32.mrf.mxu0
    %v547 = vadd.f32 %v222, %v546
    %v548 = vpop.f32.mrf.mxu0
    %549 = vmatprep.mubr.f32.mxu0 0.0
    %550 = vmatmul.mubr.f32.gmra.mxu0 %v334
    %v551 = vpop.f32.mrf.mxu0
    %v552 = vadd.f32 %v227, %v551
    %v553 = vpop.f32.mrf.mxu0
    %554 = vmatprep.mubr.f32.mxu0 0.0
    %555 = vmatmul.mubr.f32.gmra.mxu0 %v337
    %v556 = vpop.f32.mrf.mxu0
    %v557 = vadd.f32 %v232, %v556
    %v558 = vpop.f32.mrf.mxu0
    %559 = vmatprep.mubr.f32.mxu0 0.0
    %560 = vmatmul.mubr.f32.gmra.mxu0 %v340
    %v561 = vpop.f32.mrf.mxu0
    %v562 = vadd.f32 %v237, %v561
    %v563 = vpop.f32.mrf.mxu0
    %564 = vmatprep.mubr.f32.mxu0 0.0
    %565 = vmatmul.mubr.f32.gmra.mxu0 %v343
    %v566 = vpop.f32.mrf.mxu0
    %v567 = vadd.f32 %v242, %v566
    %v568 = vpop.f32.mrf.mxu0
    %569 = vmatprep.mubr.f32.mxu0 0.0
    %570 = vmatmul.mubr.f32.gmra.mxu0 %v346
    %v571 = vpop.f32.mrf.mxu0
    %v572 = vadd.f32 %v247, %v571
    %v573 = vpop.f32.mrf.mxu0
    %574 = vmatprep.mubr.f32.mxu0 0.0
    %575 = vmatmul.mubr.f32.gmra.mxu0 %v349
    %v576 = vpop.f32.mrf.mxu0
    %v577 = vadd.f32 %v252, %v576
    %v578 = vpop.f32.mrf.mxu0
    %579 = vdwg.mxu0
    %v580 = vmax.f32 %v422, 0.0
    %v581 = vmax.f32 %v427, 0.0
    %v582 = vmax.f32 %v432, 0.0
    %v583 = vmax.f32 %v437, 0.0
    %v584 = vmax.f32 %v442, 0.0
    %v585 = vmax.f32 %v447, 0.0
    %v586 = vmax.f32 %v452, 0.0
    %v587 = vmax.f32 %v457, 0.0
    %v588 = vmax.f32 %v462, 0.0
    %v589 = vmax.f32 %v467, 0.0
    %v590 = vmax.f32 %v472, 0.0
    %v591 = vmax.f32 %v477, 0.0
    %v592 = vmax.f32 %v482, 0.0
    %v593 = vmax.f32 %v487, 0.0
    %v594 = vmax.f32 %v492, 0.0
    %v595 = vmax.f32 %v497, 0.0
    %v596 = vmax.f32 %v502, 0.0
    %v597 = vmax.f32 %v507, 0.0
    %v598 = vmax.f32 %v512, 0.0
    %v599 = vmax.f32 %v517, 0.0
    %v600 = vmax.f32 %v522, 0.0
    %v601 = vmax.f32 %v527, 0.0
    %v602 = vmax.f32 %v532, 0.0
    %v603 = vmax.f32 %v537, 0.0
    %v604 = vmax.f32 %v542, 0.0
    %v605 = vmax.f32 %v547, 0.0
    %v606 = vmax.f32 %v552, 0.0
    %v607 = vmax.f32 %v557, 0.0
    %v608 = vmax.f32 %v562, 0.0
    %v609 = vmax.f32 %v567, 0.0
    %v610 = vmax.f32 %v572, 0.0
    %v611 = vmax.f32 %v577, 0.0
    %v612 = vld [vmem:[%s3] sm:$0xff]
    %v613 = vld [vmem:[%s3 + $0x8] sm:$0xff]
    %v614 = vld [vmem:[%s3 + $0x10] sm:$0xff]
    %v615 = vld [vmem:[%s3 + $0x18] sm:$0xff]
    %v616 = vld [vmem:[%s3 + $0x20] sm:$0xff]
    %v617 = vld [vmem:[%s3 + $0x28] sm:$0xff]
    %v618 = vld [vmem:[%s3 + $0x30] sm:$0xff]
    %v619 = vld [vmem:[%s3 + $0x38] sm:$0xff]
    %v620 = vld [vmem:[%s3 + $0x40] sm:$0xff]
    %v621 = vld [vmem:[%s3 + $0x48] sm:$0xff]
    %v622 = vld [vmem:[%s3 + $0x50] sm:$0xff]
    %v623 = vld [vmem:[%s3 + $0x58] sm:$0xff]
    %v624 = vld [vmem:[%s3 + $0x60] sm:$0xff]
    %v625 = vld [vmem:[%s3 + $0x68] sm:$0xff]
    %v626 = vld [vmem:[%s3 + $0x70] sm:$0xff]
    %v627 = vld [vmem:[%s3 + $0x78] sm:$0xff]
    %v628 = vpack.c.bf16 %v581, %v580
    %v629 = vpack.c.bf16 %v583, %v582
    %v630 = vpack.c.bf16 %v585, %v584
    %v631 = vpack.c.bf16 %v587, %v586
    %v632 = vpack.c.bf16 %v589, %v588
    %v633 = vpack.c.bf16 %v591, %v590
    %v634 = vpack.c.bf16 %v593, %v592
    %v635 = vpack.c.bf16 %v595, %v594
    %v636 = vpack.c.bf16 %v597, %v596
    %v637 = vpack.c.bf16 %v599, %v598
    %v638 = vpack.c.bf16 %v601, %v600
    %v639 = vpack.c.bf16 %v603, %v602
    %v640 = vpack.c.bf16 %v605, %v604
    %v641 = vpack.c.bf16 %v607, %v606
    %v642 = vpack.c.bf16 %v609, %v608
    %v643 = vpack.c.bf16 %v611, %v610
    %v644 = vld [vmem:[%s4] sm:$0xff]
    %v645 = vld [vmem:[%s4 + $0x8] sm:$0xff]
    %v646 = vld [vmem:[%s4 + $0x10] sm:$0xff]
    %v647 = vld [vmem:[%s4 + $0x18] sm:$0xff]
    %v648 = vld [vmem:[%s4 + $0x20] sm:$0xff]
    %v649 = vld [vmem:[%s4 + $0x28] sm:$0xff]
    %v650 = vld [vmem:[%s4 + $0x30] sm:$0xff]
    %v651 = vld [vmem:[%s4 + $0x38] sm:$0xff]
    %v652 = vld [vmem:[%s4 + $0x40] sm:$0xff]
    %v653 = vld [vmem:[%s4 + $0x48] sm:$0xff]
    %v654 = vld [vmem:[%s4 + $0x50] sm:$0xff]
    %v655 = vld [vmem:[%s4 + $0x58] sm:$0xff]
    %v656 = vld [vmem:[%s4 + $0x60] sm:$0xff]
    %v657 = vld [vmem:[%s4 + $0x68] sm:$0xff]
    %v658 = vld [vmem:[%s4 + $0x70] sm:$0xff]
    %v659 = vld [vmem:[%s4 + $0x78] sm:$0xff]
    %661 = vset.pattern.permute.xlu0 0
    %662 = vperm.xlu0 %661, %v644
    %v663 = vpop.permute.xlu0 %662
    %666 = vset.pattern.permute.xlu0 0
    %667 = vperm.xlu0 %666, %v645
    %v668 = vpop.permute.xlu0 %667
    %671 = vset.pattern.permute.xlu0 0
    %672 = vperm.xlu0 %671, %v646
    %v673 = vpop.permute.xlu0 %672
    %676 = vset.pattern.permute.xlu0 0
    %677 = vperm.xlu0 %676, %v647
    %v678 = vpop.permute.xlu0 %677
    %681 = vset.pattern.permute.xlu0 0
    %682 = vperm.xlu0 %681, %v648
    %v683 = vpop.permute.xlu0 %682
    %686 = vset.pattern.permute.xlu0 0
    %687 = vperm.xlu0 %686, %v649
    %v688 = vpop.permute.xlu0 %687
    %691 = vset.pattern.permute.xlu0 0
    %692 = vperm.xlu0 %691, %v650
    %v693 = vpop.permute.xlu0 %692
    %696 = vset.pattern.permute.xlu0 0
    %697 = vperm.xlu0 %696, %v651
    %v698 = vpop.permute.xlu0 %697
    %701 = vset.pattern.permute.xlu0 0
    %702 = vperm.xlu0 %701, %v652
    %v703 = vpop.permute.xlu0 %702
    %706 = vset.pattern.permute.xlu0 0
    %707 = vperm.xlu0 %706, %v653
    %v708 = vpop.permute.xlu0 %707
    %711 = vset.pattern.permute.xlu0 0
    %712 = vperm.xlu0 %711, %v654
    %v713 = vpop.permute.xlu0 %712
    %716 = vset.pattern.permute.xlu0 0
    %717 = vperm.xlu0 %716, %v655
    %v718 = vpop.permute.xlu0 %717
    %721 = vset.pattern.permute.xlu0 0
    %722 = vperm.xlu0 %721, %v656
    %v723 = vpop.permute.xlu0 %722
    %726 = vset.pattern.permute.xlu0 0
    %727 = vperm.xlu0 %726, %v657
    %v728 = vpop.permute.xlu0 %727
    %731 = vset.pattern.permute.xlu0 0
    %732 = vperm.xlu0 %731, %v658
    %v733 = vpop.permute.xlu0 %732
    %736 = vset.pattern.permute.xlu0 0
    %737 = vperm.xlu0 %736, %v659
    %v738 = vpop.permute.xlu0 %737
    %v756 = vunpack.c.l.b16 %v612
    %v757 = vunpack.c.h.b16 %v612
    %v758 = vunpack.c.l.b16 %v613
    %v759 = vunpack.c.h.b16 %v613
    %v760 = vunpack.c.l.b16 %v614
    %v761 = vunpack.c.h.b16 %v614
    %v762 = vunpack.c.l.b16 %v615
    %v763 = vunpack.c.h.b16 %v615
    %v764 = vunpack.c.l.b16 %v616
    %v765 = vunpack.c.h.b16 %v616
    %v766 = vunpack.c.l.b16 %v617
    %v767 = vunpack.c.h.b16 %v617
    %v768 = vunpack.c.l.b16 %v618
    %v769 = vunpack.c.h.b16 %v618
    %v770 = vunpack.c.l.b16 %v619
    %v771 = vunpack.c.h.b16 %v619
    %v772 = vunpack.c.l.b16 %v620
    %v773 = vunpack.c.h.b16 %v620
    %v774 = vunpack.c.l.b16 %v621
    %v775 = vunpack.c.h.b16 %v621
    %v776 = vunpack.c.l.b16 %v622
    %v777 = vunpack.c.h.b16 %v622
    %v778 = vunpack.c.l.b16 %v623
    %v779 = vunpack.c.h.b16 %v623
    %v780 = vunpack.c.l.b16 %v624
    %v781 = vunpack.c.h.b16 %v624
    %v782 = vunpack.c.l.b16 %v625
    %v783 = vunpack.c.h.b16 %v625
    %v784 = vunpack.c.l.b16 %v626
    %v785 = vunpack.c.h.b16 %v626
    %v786 = vunpack.c.l.b16 %v627
    %v787 = vunpack.c.h.b16 %v627
    %v788 = vpack.c.b16 %v758, %v756
    %v789 = vpack.c.b16 %v759, %v757
    %v790 = vpack.c.b16 %v762, %v760
    %v791 = vpack.c.b16 %v763, %v761
    %v792 = vpack.c.b16 %v766, %v764
    %v793 = vpack.c.b16 %v767, %v765
    %v794 = vpack.c.b16 %v770, %v768
    %v795 = vpack.c.b16 %v771, %v769
    %v796 = vpack.c.b16 %v774, %v772
    %v797 = vpack.c.b16 %v775, %v773
    %v798 = vpack.c.b16 %v778, %v776
    %v799 = vpack.c.b16 %v779, %v777
    %v800 = vpack.c.b16 %v782, %v780
    %v801 = vpack.c.b16 %v783, %v781
    %v802 = vpack.c.b16 %v786, %v784
    %v803 = vpack.c.b16 %v787, %v785
    %820 = vmatprep.subr.bf16.mxu0 0
    %821 = vmatpush1.bf16.msra.mxu0 %v635
    %822 = vmatprep.subr.bf16.mxu0 0
    %823 = vmatpush1.bf16.msra.mxu0 %v634
    %824 = vmatprep.subr.bf16.mxu0 0
    %825 = vmatpush1.bf16.msra.mxu0 %v633
    %826 = vmatprep.subr.bf16.mxu0 0
    %827 = vmatpush1.bf16.msra.mxu0 %v632
    %828 = vmatprep.subr.bf16.mxu0 0
    %829 = vmatpush1.bf16.msra.mxu0 %v631
    %830 = vmatprep.subr.bf16.mxu0 0
    %831 = vmatpush1.bf16.msra.mxu0 %v630
    %832 = vmatprep.subr.bf16.mxu0 0
    %833 = vmatpush1.bf16.msra.mxu0 %v629
    %834 = vmatprep.subr.bf16.mxu0 0
    %835 = vmatpush1.bf16.msra.mxu0 %v628
    %836 = vmatprep.subr.bf16.mxu0 0
    %837 = vmatpush2.bf16.msra.mxu0 %v643
    %838 = vmatprep.subr.bf16.mxu0 0
    %839 = vmatpush2.bf16.msra.mxu0 %v642
    %840 = vmatprep.subr.bf16.mxu0 0
    %841 = vmatpush2.bf16.msra.mxu0 %v641
    %842 = vmatprep.subr.bf16.mxu0 0
    %843 = vmatpush2.bf16.msra.mxu0 %v640
    %844 = vmatprep.subr.bf16.mxu0 0
    %845 = vmatpush2.bf16.msra.mxu0 %v639
    %846 = vmatprep.subr.bf16.mxu0 0
    %847 = vmatpush2.bf16.msra.mxu0 %v638
    %848 = vmatprep.subr.bf16.mxu0 0
    %849 = vmatpush2.bf16.msra.mxu0 %v637
    %850 = vmatprep.subr.bf16.mxu0 0
    %851 = vmatpush2.bf16.msra.mxu0 %v636
    %852 = vmatprep.mubr.bf16.mxu0 %v789
    %853 = vmatmul.mubr.bf16.gmra.mxu0 %v788
    %v854 = vpop.f32.mrf.mxu0
    %v855 = vadd.f32 %v663, %v854
    %v856 = vpop.f32.mrf.mxu0
    %v857 = vpop.f32.mrf.mxu0
    %v858 = vadd.f32 %v668, %v857
    %v859 = vpop.f32.mrf.mxu0
    %860 = vmatprep.mubr.bf16.mxu0 %v791
    %861 = vmatmul.mubr.bf16.gmra.mxu0 %v790
    %v862 = vpop.f32.mrf.mxu0
    %v863 = vadd.f32 %v673, %v862
    %v864 = vpop.f32.mrf.mxu0
    %v865 = vpop.f32.mrf.mxu0
    %v866 = vadd.f32 %v678, %v865
    %v867 = vpop.f32.mrf.mxu0
    %868 = vmatprep.mubr.bf16.mxu0 %v793
    %869 = vmatmul.mubr.bf16.gmra.mxu0 %v792
    %v870 = vpop.f32.mrf.mxu0
    %v871 = vadd.f32 %v683, %v870
    %v872 = vpop.f32.mrf.mxu0
    %v873 = vpop.f32.mrf.mxu0
    %v874 = vadd.f32 %v688, %v873
    %v875 = vpop.f32.mrf.mxu0
    %876 = vmatprep.mubr.bf16.mxu0 %v795
    %877 = vmatmul.mubr.bf16.gmra.mxu0 %v794
    %v878 = vpop.f32.mrf.mxu0
    %v879 = vadd.f32 %v693, %v878
    %v880 = vpop.f32.mrf.mxu0
    %v881 = vpop.f32.mrf.mxu0
    %v882 = vadd.f32 %v698, %v881
    %v883 = vpop.f32.mrf.mxu0
    %884 = vmatprep.mubr.bf16.mxu0 %v797
    %885 = vmatmul.mubr.bf16.gmra.mxu0 %v796
    %v886 = vpop.f32.mrf.mxu0
    %v887 = vadd.f32 %v703, %v886
    %v888 = vpop.f32.mrf.mxu0
    %v889 = vpop.f32.mrf.mxu0
    %v890 = vadd.f32 %v708, %v889
    %v891 = vpop.f32.mrf.mxu0
    %892 = vmatprep.mubr.bf16.mxu0 %v799
    %893 = vmatmul.mubr.bf16.gmra.mxu0 %v798
    %v894 = vpop.f32.mrf.mxu0
    %v895 = vadd.f32 %v713, %v894
    %v896 = vpop.f32.mrf.mxu0
    %v897 = vpop.f32.mrf.mxu0
    %v898 = vadd.f32 %v718, %v897
    %v899 = vpop.f32.mrf.mxu0
    %900 = vmatprep.mubr.bf16.mxu0 %v801
    %901 = vmatmul.mubr.bf16.gmra.mxu0 %v800
    %v902 = vpop.f32.mrf.mxu0
    %v903 = vadd.f32 %v723, %v902
    %v904 = vpop.f32.mrf.mxu0
    %v905 = vpop.f32.mrf.mxu0
    %v906 = vadd.f32 %v728, %v905
    %v907 = vpop.f32.mrf.mxu0
    %908 = vmatprep.mubr.bf16.mxu0 %v803
    %909 = vmatmul.mubr.bf16.gmra.mxu0 %v802
    %v910 = vpop.f32.mrf.mxu0
    %v911 = vadd.f32 %v733, %v910
    %v912 = vpop.f32.mrf.mxu0
    %v913 = vpop.f32.mrf.mxu0
    %v914 = vadd.f32 %v738, %v913
    %v915 = vpop.f32.mrf.mxu0
    %916 = vdwg.mxu0
    %v917 = vmax.f32 %v855, 0.0
    %v918 = vmax.f32 %v858, 0.0
    %v919 = vmax.f32 %v863, 0.0
    %v920 = vmax.f32 %v866, 0.0
    %v921 = vmax.f32 %v871, 0.0
    %v922 = vmax.f32 %v874, 0.0
    %v923 = vmax.f32 %v879, 0.0
    %v924 = vmax.f32 %v882, 0.0
    %v925 = vmax.f32 %v887, 0.0
    %v926 = vmax.f32 %v890, 0.0
    %v927 = vmax.f32 %v895, 0.0
    %v928 = vmax.f32 %v898, 0.0
    %v929 = vmax.f32 %v903, 0.0
    %v930 = vmax.f32 %v906, 0.0
    %v931 = vmax.f32 %v911, 0.0
    %v932 = vmax.f32 %v914, 0.0
    %v933 = vld [vmem:[%s5] sm:$0x1]
    %v934 = vpack.c.bf16 %v918, %v917
    %v935 = vpack.c.bf16 %v920, %v919
    %v936 = vpack.c.bf16 %v922, %v921
    %v937 = vpack.c.bf16 %v924, %v923
    %v938 = vpack.c.bf16 %v926, %v925
    %v939 = vpack.c.bf16 %v928, %v927
    %v940 = vpack.c.bf16 %v930, %v929
    %v941 = vpack.c.bf16 %v932, %v931
    %s942 = sld [smem:[#allocation2]]
    %v943 = vstv %s942
    %944 = vmatprep.subr.bf16.mxu0 0
    %945 = vmatpush1.bf16.msra.mxu0 %v941
    %946 = vmatprep.subr.bf16.mxu0 0
    %947 = vmatpush1.bf16.msra.mxu0 %v940
    %948 = vmatprep.subr.bf16.mxu0 0
    %949 = vmatpush1.bf16.msra.mxu0 %v939
    %950 = vmatprep.subr.bf16.mxu0 0
    %951 = vmatpush1.bf16.msra.mxu0 %v938
    %952 = vmatprep.subr.bf16.mxu0 0
    %953 = vmatpush1.bf16.msra.mxu0 %v937
    %954 = vmatprep.subr.bf16.mxu0 0
    %955 = vmatpush1.bf16.msra.mxu0 %v936
    %956 = vmatprep.subr.bf16.mxu0 0
    %957 = vmatpush1.bf16.msra.mxu0 %v935
    %958 = vmatprep.subr.bf16.mxu0 0
    %959 = vmatpush1.bf16.msra.mxu0 %v934
    %960 = vmatprep.subr.bf16.mxu0 0
    %961 = vmatpush2.bf16.msra.mxu0 0
    %962 = vmatprep.subr.bf16.mxu0 0
    %963 = vmatpush2.bf16.msra.mxu0 0
    %964 = vmatprep.subr.bf16.mxu0 0
    %965 = vmatpush2.bf16.msra.mxu0 0
    %966 = vmatprep.subr.bf16.mxu0 0
    %967 = vmatpush2.bf16.msra.mxu0 0
    %968 = vmatprep.subr.bf16.mxu0 0
    %969 = vmatpush2.bf16.msra.mxu0 0
    %970 = vmatprep.subr.bf16.mxu0 0
    %971 = vmatpush2.bf16.msra.mxu0 0
    %972 = vmatprep.subr.bf16.mxu0 0
    %973 = vmatpush2.bf16.msra.mxu0 0
    %974 = vmatprep.subr.bf16.mxu0 0
    %975 = vmatpush2.bf16.msra.mxu0 0
    %976 = vmatprep.mubr.bf16.mxu0 0
    %977 = vmatmul.mubr.bf16.gmra.mxu0 %v933
    %v978 = vpop.f32.mrf.mxu0
    %v979 = vadd.f32 %v943, %v978
    %v980 = vpop.f32.mrf.mxu0
    %v981 = vpop.f32.mrf.mxu0
    %v982 = vpop.f32.mrf.mxu0
    %983 = vdwg.mxu0
    %984 = vst [vmem:[#allocation3] sm:$0x1] %v979
    // Predicated region
    $region30: #{tpu_custom_call.1} parent=1 // pred_check
      _
    $region31: #{tpu_custom_call.1} parent=1 // pred_check_branch
      %986 = sbr.rel (0) target = $region33
    $region32: #{tpu_custom_call.1} parent=1 // pred_region
      %s988 = ssub.s32 16, 16
      %989 = vsyncadd [#allocation4], %s988
      %s991 = sshll.u32 [#allocation3], 4
      %s992 = int_to_ptr.vmem [resolvable:$true] %s991
      %994 = dma.vmem_to_hbm [thread:$0]  %s992, 16, %s7, [#allocation4]
    $region33: #{tpu_custom_call.1} parent=1 // pred_fallthru
      _
    // Predicated region
    $region34: #{tpu_custom_call.1} parent=1 // pred_check
      _
    $region35: #{tpu_custom_call.1} parent=1 // pred_check_branch
      %996 = sbr.rel (0) target = $region37
    $region36: #{tpu_custom_call.1} parent=1 // pred_region
      %997 = dma.done [#allocation4], 16
    $region37: #{tpu_custom_call.1} parent=1 // pred_fallthru
      _
    %998 = vsyncpa [#allocation4], 1

</llo_original>
